<compile_context>
chip_gen: v6e
topology: v6e:2x2x1
jax: 0.10.0
libtpu: 0.0.40
codegen_flags: <defaults>
</compile_context>

<pallas_src>
import functools

import jax
import jax.numpy as jnp
from jax.experimental import pallas as pl
from jax.experimental.pallas import tpu as pltpu


def _round_up(x: int, m: int) -> int:
    return ((x + m - 1) // m) * m


# ----------------------------------------------------------------------------
# Forward kernel: wrapped nn.Linear  (y = x @ W_t + b), row-tiled.
# ----------------------------------------------------------------------------
def _linear_kernel(x_ref, w_ref, b_ref, o_ref):
    # x_ref : (TM, in_f)       -- one row tile, streamed per grid step
    # w_ref : (in_f, out_pad)  -- resident across the grid (constant index_map)
    # b_ref : (1, out_pad)     -- resident across the grid
    # o_ref : (TM, out_pad)    -- lane-dense (out_pad multiple of 128)
    acc = jnp.dot(x_ref[...], w_ref[...], preferred_element_type=jnp.float32)
    o_ref[...] = (acc + b_ref[...]).astype(o_ref.dtype)


@functools.partial(jax.jit, static_argnames=("block_rows",))
def weight_decay_forward(x, w_t, b, *, block_rows: int = 512):
    """Forward of WeightDecay == forward of the wrapped Linear module.

    x   : [rows, in_features]             float32
    w_t : [in_features, out_features]     float32 (PyTorch weight, transposed)
    b   : [out_features]                  float32
    block_rows : row-tile size.  512 is safe on every generation (v5e 16 MiB
                 scoped default, v7x 64 MiB physical VMEM); at production
                 sizes use 512 on v7x / up to 1024 on v5e-v6e.
    """
    rows, in_f = x.shape
    out_f = w_t.shape[1]

    # Lane-dense output: pad the output feature axis up to a multiple of 128.
    out_pad = _round_up(max(out_f, 128), 128)

    # Row tiling: TM is a multiple of 8 (sublane), rows padded to a multiple
    # of TM so every grid step sees a full tile.
    tm = min(block_rows, _round_up(rows, 8))
    rows_pad = _round_up(rows, tm)
    grid = (rows_pad // tm,)

    # Wrapper-side padding (zeros contribute nothing to the matmul; padded
    # rows/columns are sliced away below).
    x_p = jnp.zeros((rows_pad, in_f), x.dtype).at[:rows, :].set(x)
    w_p = jnp.zeros((in_f, out_pad), w_t.dtype).at[:, :out_f].set(w_t)
    b_p = jnp.zeros((1, out_pad), b.dtype).at[0, :out_f].set(b)

    itemsize = jnp.dtype(x.dtype).itemsize
    cost = pl.CostEstimate(
        flops=2 * rows_pad * in_f * out_pad,
        transcendentals=0,
        bytes_accessed=(rows_pad * in_f + in_f * out_pad + out_pad
                        + rows_pad * out_pad) * itemsize,
    )

    out = pl.pallas_call(
        _linear_kernel,
        out_shape=jax.ShapeDtypeStruct((rows_pad, out_pad), x.dtype),
        grid=grid,
        in_specs=[
            # Activations: streamed row tile (double-buffered by Pallas).
            pl.BlockSpec((tm, in_f), lambda i: (i, 0)),
            # Weight: resident in VMEM for the whole grid.
            pl.BlockSpec((in_f, out_pad), lambda i: (0, 0)),
            # Bias: resident in VMEM for the whole grid.
            pl.BlockSpec((1, out_pad), lambda i: (0, 0)),
        ],
        out_specs=pl.BlockSpec((tm, out_pad), lambda i: (i, 0)),
        compiler_params=pltpu.CompilerParams(
            # Row tiles are independent -> shard across both TCs on v7x.
            dimension_semantics=("parallel",),
        ),
        cost_estimate=cost,
    )(x_p, w_p, b_p)

    return out[:rows, :out_f]


# ----------------------------------------------------------------------------
# Regularize (representative L2 subclass): grad = weight_decay * param.
# ----------------------------------------------------------------------------
# TODO(synk): WeightDecay.regularize is abstract and the backward-hook
# gradient injection has no Pallas equivalent; per the perf review a
# standalone Pallas launch for a single-vreg elementwise scale is a pure
# regression, so the canonical L2 form is left to plain jnp (XLA fuses it
# into the surrounding optimizer update).
def regularize(param, weight_decay):
    return weight_decay * param


if __name__ == "__main__":
    key = jax.random.PRNGKey(0)
    k_x, k_w, k_b = jax.random.split(key, 3)

    batch, seq, hidden = 2, 8, 32
    rows = batch * seq  # 16

    # Deterministic synthetic parameters for the wrapped Linear(hidden, hidden)
    x = jax.random.normal(k_x, (rows, hidden), dtype=jnp.float32)
    w = jax.random.normal(k_w, (hidden, hidden), dtype=jnp.float32) * 0.1  # [out, in]
    b = jax.random.normal(k_b, (hidden,), dtype=jnp.float32) * 0.1
    weight_decay = 1e-2

    # Forward pass (delegates to wrapped Linear).  block_rows=8 exercises the
    # multi-step row grid (grid=(2,)) even at these toy shapes; at realistic
    # sizes the default 512-row tile is used.
    y = weight_decay_forward(x, w.T, b, block_rows=8)
    y = jax.block_until_ready(y)

    # Regularize path (weight-decay gradient for the weight parameter).
    g = jax.block_until_ready(regularize(w, weight_decay))

    # Reference checks (plain JAX)
    y_ref = x @ w.T + b
    g_ref = weight_decay * w
    assert jnp.allclose(y, y_ref, atol=1e-4, rtol=1e-4), "forward mismatch"
    assert jnp.allclose(g, g_ref, atol=1e-6, rtol=1e-6), "regularize mismatch"

    print("KERNEL_OK")
</pallas_src>

<mosaic_0001>
module attributes {stable_mosaic.version = 11 : i64} {
  func.func @_linear_kernel(%arg0: i32, %arg1: memref<8x32xf32, #tpu.memory_space<vmem>>, %arg2: memref<32x128xf32, #tpu.memory_space<vmem>>, %arg3: memref<1x128xf32, #tpu.memory_space<vmem>>, %arg4: memref<8x128xf32, #tpu.memory_space<vmem>>) attributes {dimension_semantics = [#tpu.dimension_semantics<parallel>], iteration_bounds = array<i64: 2>, scalar_prefetch = 0 : i64, scratch_operands = 0 : i64, tpu.core_type = #tpu.core_type<tc>, window_params = [{transform_indices = @transform_0, window_bounds = array<i64: 8, 32>}, {pipeline_mode = #tpu.pipeline_mode<synchronous>, transform_indices = @transform_1, window_bounds = array<i64: 32, 128>}, {pipeline_mode = #tpu.pipeline_mode<synchronous>, transform_indices = @transform_2, window_bounds = array<i64: 1, 128>}, {transform_indices = @transform_3, window_bounds = array<i64: 8, 128>}]} {
    %c0 = arith.constant 0 : index
    %c0_0 = arith.constant 0 : index
    %0 = vector.load %arg1[%c0, %c0_0] : memref<8x32xf32, #tpu.memory_space<vmem>>, vector<8x32xf32>
    %c0_1 = arith.constant 0 : index
    %c0_2 = arith.constant 0 : index
    %1 = vector.load %arg2[%c0_1, %c0_2] : memref<32x128xf32, #tpu.memory_space<vmem>>, vector<32x128xf32>
    %cst = arith.constant dense<0.000000e+00> : vector<8x128xf32>
    %2 = tpu.matmul %0, %1, %cst {dimension_numbers = #tpu.dot_dimension_numbers<[1], [0], [0], [1], [0, 0, 1, 1], [], []>} : vector<8x32xf32>, vector<32x128xf32>, vector<8x128xf32> -> vector<8x128xf32>
    %c0_3 = arith.constant 0 : index
    %c0_4 = arith.constant 0 : index
    %3 = vector.load %arg3[%c0_3, %c0_4] : memref<1x128xf32, #tpu.memory_space<vmem>>, vector<1x128xf32>
    %4 = vector.broadcast %3 : vector<1x128xf32> to vector<8x128xf32>
    %5 = arith.addf %2, %4 : vector<8x128xf32>
    %c0_5 = arith.constant 0 : index
    %c0_6 = arith.constant 0 : index
    %6 = vector.load %arg4[%c0_5, %c0_6] : memref<8x128xf32, #tpu.memory_space<vmem>>, vector<8x128xf32>
    tpu.vector_store %arg4[%c0_5, %c0_6], %5 {strides = array<i32>} : memref<8x128xf32, #tpu.memory_space<vmem>>, vector<8x128xf32>,
    return
  }
  func.func @transform_0(%arg0: i32) -> (i32, i32) {
    %c0_i32 = arith.constant 0 : i32
    %c0_i32_0 = arith.constant 0 : i32
    return %arg0, %c0_i32 : i32, i32
  }
  func.func @transform_1(%arg0: i32) -> (i32, i32) {
    %c0_i32 = arith.constant 0 : i32
    %c0_i32_0 = arith.constant 0 : i32
    %c0_i32_1 = arith.constant 0 : i32
    return %c0_i32, %c0_i32_0 : i32, i32
  }
  func.func @transform_2(%arg0: i32) -> (i32, i32) {
    %c0_i32 = arith.constant 0 : i32
    %c0_i32_0 = arith.constant 0 : i32
    %c0_i32_1 = arith.constant 0 : i32
    return %c0_i32, %c0_i32_0 : i32, i32
  }
  func.func @transform_3(%arg0: i32) -> (i32, i32) {
    %c0_i32 = arith.constant 0 : i32
    %c0_i32_0 = arith.constant 0 : i32
    return %arg0, %c0_i32 : i32, i32
  }
}

</mosaic_0001>

<llo_original>
// kernel: weight_decay_forward.1
$region0: #{weight_decay_forward.1}
  #allocation0 [shape = 'u32[]', space=smem, size = 0x4, offset = 0x4, fixed_abs, tag = 'smem constant byte address 0x4 - core index']
  #allocation1 [shape = 'u32[144,128]{1,0:T(1,128)}', space=vmem, size = 0x12000, scoped, tag = 'internal scratch']
  %s0 = inlined_call_operand.vmem [shape: f32[16,32], index: 0, kind: input, shape index: {}]
  %s1 = inlined_call_operand.vmem [shape: f32[32,128], index: 1, kind: input, shape index: {}]
  %s2 = inlined_call_operand.vmem [shape: f32[1,128], index: 2, kind: input, shape index: {}]
  %s3 = inlined_call_operand.hbm [shape: f32[16,128], index: 3, kind: output, shape index: {}]
  %s4 = sld [smem:[#allocation0]]
  $region45: #{weight_decay_forward.1} parent=0
    _
  %s6 = ssub.s32 1, %s4
  %s7 = scalar_select 0, %s6, %s4
  $region1: #{weight_decay_forward.1} parent=0
    #allocation2 [shape = 'u8[8192]{0}', space=vmem, size = 0x2000, scoped, tag = 'output window, operand 0']
    #allocation3 [shape = 's32[2]{0}', space=sflag, size = 0x8, scoped, tag = 'scoped memory for weight_decay_forward.1']
    %8 = vsyncpa [#allocation3], 0
    %s9 = scalar_lea.sflag [#allocation3], 1
    %10 = vsyncpa %s9, 0
    loop: start=0, step=1, limit=4
    $region2: #{weight_decay_forward.1} parent=1 // loop_pre_header
      _
    $region3: #{weight_decay_forward.1} parent=1 // loop_header
      %s12 = sphi 0, %s16
      %p13 = scmp.ge.s32.totalorder %s12, 4
      %s22 = sphi 0, %s24
      %s25 = sphi 0, %s22
      %s26 = sphi 0, %s25
      %s42 = sphi 0, %s26
      %s46 = sphi 0, %s46
      %s48 = sphi 0, %s46
      %s49 = sphi 0, %s48
      %s63 = sphi 0, %s49
      %s67 = sphi 0, %s67
      %s69 = sphi 0, %s67
      %s70 = sphi 0, %s69
      %s84 = sphi 0, %s70
      %s90 = sphi 0, %s92
      %s93 = sphi 0, %s90
      %s94 = sphi 0, %s93
      %s110 = sphi 0, %s94
    $region4: #{weight_decay_forward.1} parent=1 // loop_header_branch
      %15 = sbr.rel (%p13) target = $region8
    $region5: #{weight_decay_forward.1} parent=1 // loop_body
      %s17 = ssub.s32 %s12, 1
      %s18 = ssub.s32 %s12, 2
      %s19 = sadd.s32 %s12, 1
      %s20 = ssub.s32 %s12, %s19
      %p21 = scmp.eq.s32.totalorder %s20, 0
      %s23 = sadd.s32 %s22, 1
      %s24 = scalar_select %p21, %s22, %s23
      %p27 = pneg %p21
      %p28 = scmp.eq.s32.totalorder %s12, 1
      %p29 = por %p27, %p28
      %p30 = scmp.ne.s32.totalorder %s22, %s25
      %p31 = scmp.eq.s32.totalorder %s12, 0
      %p32 = por %p30, %p31
      %p33 = scmp.ne.s32.totalorder %s22, %s25
      %p34 = scmp.eq.s32.totalorder %s17, 1
      %p35 = por %p33, %p34
      %p36 = scmp.ne.s32.totalorder %s25, %s26
      %p37 = scmp.eq.s32.totalorder %s17, 0
      %p38 = por %p36, %p37
      %p39 = scmp.ne.s32.totalorder %s25, %s26
      %p40 = scmp.eq.s32.totalorder %s18, 1
      %p41 = por %p39, %p40
      %p43 = scmp.ne.s32.totalorder %s26, %s42
      %p44 = scmp.eq.s32.totalorder %s18, 0
      %p45 = por %p43, %p44
      %s47 = sadd.s32 %s46, 1
      %p50 = scmp.eq.s32.totalorder %s12, 1
      %p51 = scmp.ne.s32.totalorder %s46, %s48
      %p52 = scmp.eq.s32.totalorder %s12, 0
      %p53 = por %p51, %p52
      %p54 = scmp.ne.s32.totalorder %s46, %s48
      %p55 = scmp.eq.s32.totalorder %s17, 1
      %p56 = por %p54, %p55
      %p57 = scmp.ne.s32.totalorder %s48, %s49
      %p58 = scmp.eq.s32.totalorder %s17, 0
      %p59 = por %p57, %p58
      %p60 = scmp.ne.s32.totalorder %s48, %s49
      %p61 = scmp.eq.s32.totalorder %s18, 1
      %p62 = por %p60, %p61
      %p64 = scmp.ne.s32.totalorder %s49, %s63
      %p65 = scmp.eq.s32.totalorder %s18, 0
      %p66 = por %p64, %p65
      %s68 = sadd.s32 %s67, 1
      %p71 = scmp.eq.s32.totalorder %s12, 1
      %p72 = scmp.ne.s32.totalorder %s67, %s69
      %p73 = scmp.eq.s32.totalorder %s12, 0
      %p74 = por %p72, %p73
      %p75 = scmp.ne.s32.totalorder %s67, %s69
      %p76 = scmp.eq.s32.totalorder %s17, 1
      %p77 = por %p75, %p76
      %p78 = scmp.ne.s32.totalorder %s69, %s70
      %p79 = scmp.eq.s32.totalorder %s17, 0
      %p80 = por %p78, %p79
      %p81 = scmp.ne.s32.totalorder %s69, %s70
      %p82 = scmp.eq.s32.totalorder %s18, 1
      %p83 = por %p81, %p82
      %p85 = scmp.ne.s32.totalorder %s70, %s84
      %p86 = scmp.eq.s32.totalorder %s18, 0
      %p87 = por %p85, %p86
      %s88 = ssub.s32 %s12, %s19
      %p89 = scmp.eq.s32.totalorder %s88, 0
      %s91 = sadd.s32 %s90, 1
      %s92 = scalar_select %p89, %s90, %s91
      %p95 = pneg %p89
      %p96 = scmp.eq.s32.totalorder %s12, 1
      %p97 = por %p95, %p96
      %p98 = scmp.ne.s32.totalorder %s90, %s93
      %p99 = scmp.eq.s32.totalorder %s12, 0
      %p100 = por %p98, %p99
      %p101 = scmp.ne.s32.totalorder %s90, %s93
      %p102 = scmp.eq.s32.totalorder %s17, 1
      %p103 = por %p101, %p102
      %p104 = scmp.ne.s32.totalorder %s93, %s94
      %p105 = scmp.eq.s32.totalorder %s17, 0
      %p106 = por %p104, %p105
      %p107 = scmp.ne.s32.totalorder %s93, %s94
      %p108 = scmp.eq.s32.totalorder %s18, 1
      %p109 = por %p107, %p108
      %p111 = scmp.ne.s32.totalorder %s94, %s110
      %p112 = scmp.eq.s32.totalorder %s18, 0
      %p113 = por %p111, %p112
      %p114 = scmp.le.s32.totalorder 1, %s12
      %p115 = scmp.lt.s32.totalorder %s12, 3
      %p116 = pnand %p114, %p115
      %p117 = pneg %p116
      // Predicated region
      $region9: #{weight_decay_forward.1} parent=5 // pred_check
        _
      $region10: #{weight_decay_forward.1} parent=5 // pred_check_branch
        %119 = sbr.rel (%p116) target = $region12
      $region11: #{weight_decay_forward.1} parent=5 // pred_region
        %s120 = ssub.s32 %s12, 1
        // Predicated region
        $region13: #{weight_decay_forward.1} parent=11 // pred_check
          %p121 = pneg %p59
        $region14: #{weight_decay_forward.1} parent=11 // pred_check_branch
          %123 = sbr.rel (%p121) target = $region16
        $region15: #{weight_decay_forward.1} parent=11 // pred_region
          _
        $region16: #{weight_decay_forward.1} parent=11 // pred_fallthru
          _
        // Predicated region
        $region17: #{weight_decay_forward.1} parent=11 // pred_check
          %p124 = pneg %p80
        $region18: #{weight_decay_forward.1} parent=11 // pred_check_branch
          %126 = sbr.rel (%p124) target = $region20
        $region19: #{weight_decay_forward.1} parent=11 // pred_region
          _
        $region20: #{weight_decay_forward.1} parent=11 // pred_fallthru
          _
      $region12: #{weight_decay_forward.1} parent=5 // pred_fallthru
        _
      %p127 = scmp.lt.s32.totalorder %s12, 2
      // Predicated region
      $region21: #{weight_decay_forward.1} parent=5 // pred_check
        %p128 = pneg %p127
      $region22: #{weight_decay_forward.1} parent=5 // pred_check_branch
        %130 = sbr.rel (%p128) target = $region24
      $region23: #{weight_decay_forward.1} parent=5 // pred_region
        // Predicated region
        $region25: #{weight_decay_forward.1} parent=23 // pred_check
          %p131 = pneg %p32
        $region26: #{weight_decay_forward.1} parent=23 // pred_check_branch
          %133 = sbr.rel (%p131) target = $region28
        $region27: #{weight_decay_forward.1} parent=23 // pred_region
          %p134 = scmp.lt.s32.totalorder %s12, 1
          %s135 = scalar_select %p134, %s12, 1
          %s136 = smul.addr %s135, 8
          %s137 = scalar_lea.vmem %s0, %s136
        $region28: #{weight_decay_forward.1} parent=23 // pred_fallthru
          _
      $region24: #{weight_decay_forward.1} parent=5 // pred_fallthru
        _
      %p138 = scmp.le.s32.totalorder 1, %s12
      %p139 = scmp.lt.s32.totalorder %s12, 3
      %p140 = pnand %p138, %p139
      %p141 = pneg %p140
      // Predicated region
      $region29: #{weight_decay_forward.1} parent=5 // pred_check
        _
      $region30: #{weight_decay_forward.1} parent=5 // pred_check_branch
        %143 = sbr.rel (%p140) target = $region32
      $region31: #{weight_decay_forward.1} parent=5 // pred_region
        %s144 = ssub.s32 %s12, 1
        %p145 = scmp.lt.s32.totalorder %s17, 1
        %s146 = scalar_select %p145, %s17, 1
        %s147 = smul.addr %s146, 8
        %s148 = scalar_lea.vmem %s0, %s147
        %p149 = pneg %p38
        %p150 = pneg %p35
        %p151 = pneg %p59
        %p152 = pneg %p56
        %p153 = pneg %p80
        %p154 = pneg %p77
        %p155 = pneg %p106
        %p156 = pneg %p103
        %s157 = sand.u32 %s93, 1
        %s158 = scalar_lea.sflag [#allocation3], %s157
        %s159 = sand.u32 %s93, 1
        %s160 = smul.addr %s159, 8
        %s161 = scalar_lea.vmem [#allocation2], %s160
        %p162 = scmp.lt.s32.totalorder %s17, 1
        %s163 = scalar_select %p162, %s17, 1
        %s164 = smul.addr %s163, 8
        %s165 = scalar_lea.vmem %s0, %s164
        %v166 = vld [vmem:[%s165] sm:$0xff]
        %v167 = vld [vmem:[%s1] sm:$0xff]
        %v168 = vld [vmem:[%s1 + $0x8] sm:$0xff]
        %v169 = vld [vmem:[%s1 + $0x10] sm:$0xff]
        %v170 = vld [vmem:[%s1 + $0x18] sm:$0xff]
        %v171 = vld [vmem:[%s2] sm:$0x1]
        %v173 = vlaneseq
        %v174 = vshrl.u32 %v173, 7
        %v175 = vsub.s32 0, %v174
        %v176 = vrot.slane %v171, %v175
        %vm178 = vcmask 261120
        %v180 = vsel %vm178, %v166, 0
        %182 = vmatprep.subr.mxu0 0.0
        %183 = vmatpush1.msra.mxu0 0.0
        %184 = vmatprep.subr.mxu0 0.0
        %185 = vmatpush1.msra.mxu0 0.0
        %186 = vmatprep.subr.mxu0 0.0
        %187 = vmatpush1.msra.mxu0 0.0
        %188 = vmatprep.subr.mxu0 0.0
        %189 = vmatpush1.msra.mxu0 0.0
        %190 = vmatprep.subr.mxu0 0.0
        %191 = vmatpush1.msra.mxu0 0.0
        %192 = vmatprep.subr.mxu0 0.0
        %193 = vmatpush1.msra.mxu0 0.0
        %194 = vmatprep.subr.mxu0 0.0
        %195 = vmatpush1.msra.mxu0 0.0
        %196 = vmatprep.subr.mxu0 0.0
        %197 = vmatpush1.msra.mxu0 0.0
        %198 = vmatprep.subr.mxu0 0.0
        %199 = vmatpush1.msra.mxu0 0.0
        %200 = vmatprep.subr.mxu0 0.0
        %201 = vmatpush1.msra.mxu0 0.0
        %202 = vmatprep.subr.mxu0 0.0
        %203 = vmatpush1.msra.mxu0 0.0
        %204 = vmatprep.subr.mxu0 0.0
        %205 = vmatpush1.msra.mxu0 0.0
        %206 = vmatprep.subr.mxu0 0.0
        %207 = vmatpush1.msra.mxu0 %v170
        %208 = vmatprep.subr.mxu0 0.0
        %209 = vmatpush1.msra.mxu0 %v169
        %210 = vmatprep.subr.mxu0 0.0
        %211 = vmatpush1.msra.mxu0 %v168
        %212 = vmatprep.subr.mxu0 0.0
        %213 = vmatpush1.msra.mxu0 %v167
        %214 = vmatprep.subr.mxu0 0.0
        %215 = vmatpush2.msra.mxu0 0.0
        %216 = vmatprep.subr.mxu0 0.0
        %217 = vmatpush2.msra.mxu0 0.0
        %218 = vmatprep.subr.mxu0 0.0
        %219 = vmatpush2.msra.mxu0 0.0
        %220 = vmatprep.subr.mxu0 0.0
        %221 = vmatpush2.msra.mxu0 0.0
        %222 = vmatprep.subr.mxu0 0.0
        %223 = vmatpush2.msra.mxu0 0.0
        %224 = vmatprep.subr.mxu0 0.0
        %225 = vmatpush2.msra.mxu0 0.0
        %226 = vmatprep.subr.mxu0 0.0
        %227 = vmatpush2.msra.mxu0 0.0
        %228 = vmatprep.subr.mxu0 0.0
        %229 = vmatpush2.msra.mxu0 0.0
        %230 = vmatprep.subr.mxu0 0.0
        %231 = vmatpush2.msra.mxu0 0.0
        %232 = vmatprep.subr.mxu0 0.0
        %233 = vmatpush2.msra.mxu0 0.0
        %234 = vmatprep.subr.mxu0 0.0
        %235 = vmatpush2.msra.mxu0 0.0
        %236 = vmatprep.subr.mxu0 0.0
        %237 = vmatpush2.msra.mxu0 0.0
        %238 = vmatprep.subr.mxu0 0.0
        %239 = vmatpush2.msra.mxu0 0.0
        %240 = vmatprep.subr.mxu0 0.0
        %241 = vmatpush2.msra.mxu0 0.0
        %242 = vmatprep.subr.mxu0 0.0
        %243 = vmatpush2.msra.mxu0 0.0
        %244 = vmatprep.subr.mxu0 0.0
        %245 = vmatpush2.msra.mxu0 0.0
        %246 = vmatprep.mubr.f32.mxu0 0.0
        %247 = vmatmul.mubr.f32.gmra.mxu0 %v180
        %v248 = vpop.f32.mrf.mxu0
        %v249 = vadd.f32 %v176, %v248
        %v250 = vpop.f32.mrf.mxu0
        %251 = vdwg.mxu0
        %252 = vst [vmem:[%s161] sm:$0xff] %v249
        %s253 = sand.u32 %s93, 1
        %s254 = scalar_lea.sflag [#allocation3], %s253
        %s255 = sand.u32 %s93, 1
        %s256 = smul.addr %s255, 8
        %s257 = scalar_lea.vmem [#allocation2], %s256
        // Predicated region
        $region33: #{weight_decay_forward.1} parent=31 // pred_check
          %p258 = pneg %p103
        $region34: #{weight_decay_forward.1} parent=31 // pred_check_branch
          %260 = sbr.rel (%p258) target = $region36
        $region35: #{weight_decay_forward.1} parent=31 // pred_region
          %s262 = ssub.s32 128, 128
          %263 = vsyncadd %s254, %s262
          %s264 = smul.addr %s17, 128
          %s265 = scalar_lea.hbm %s3, %s264
          %s267 = sshll.u32 %s257, 4
          %s268 = int_to_ptr.vmem [resolvable:$true] %s267
          %270 = dma.vmem_to_hbm [thread:$0]  %s268, 128, %s265, %s254
        $region36: #{weight_decay_forward.1} parent=31 // pred_fallthru
          _
      $region32: #{weight_decay_forward.1} parent=5 // pred_fallthru
        _
      %p271 = scmp.le.s32.totalorder 2, %s12
      // Predicated region
      $region37: #{weight_decay_forward.1} parent=5 // pred_check
        %p272 = pneg %p271
      $region38: #{weight_decay_forward.1} parent=5 // pred_check_branch
        %274 = sbr.rel (%p272) target = $region40
      $region39: #{weight_decay_forward.1} parent=5 // pred_region
        %s275 = ssub.s32 %s12, 2
        // Predicated region
        $region41: #{weight_decay_forward.1} parent=39 // pred_check
          %p276 = pneg %p109
        $region42: #{weight_decay_forward.1} parent=39 // pred_check_branch
          %278 = sbr.rel (%p276) target = $region44
        $region43: #{weight_decay_forward.1} parent=39 // pred_region
          %s279 = sand.u32 %s94, 1
          %s280 = scalar_lea.sflag [#allocation3], %s279
          %s281 = sand.u32 %s94, 1
          %s282 = smul.addr %s281, 8
          %s283 = scalar_lea.vmem [#allocation2], %s282
          %284 = dma.done %s280, 128
        $region44: #{weight_decay_forward.1} parent=39 // pred_fallthru
          _
      $region40: #{weight_decay_forward.1} parent=5 // pred_fallthru
        _
    $region6: #{weight_decay_forward.1} parent=1 // loop_footer
      %s16 = sadd.s32 1, %s12
    $region7: #{weight_decay_forward.1} parent=1 // loop_footer_branch
      %11 = sbr.rel target = $region3
    $region8: #{weight_decay_forward.1} parent=1 // loop_exit
      _
    %285 = vsyncpa [#allocation3], 1
    %s286 = scalar_lea.sflag [#allocation3], 1
    %287 = vsyncpa %s286, 1

</llo_original>
